<compile_context>
chip_gen: v6e
topology: v6e:2x2x1
jax: 0.10.0
libtpu: 0.0.40
codegen_flags: <defaults>
</compile_context>

<pallas_src>
import functools

import jax
import jax.numpy as jnp
from jax import lax
from jax.experimental import pallas as pl
from jax.experimental.pallas import tpu as pltpu

EPS = 1e-6


# ----------------------------------------------------------------------------
# Monolithic single-pass kernel: whole (C, N) slab per batch element.
# ----------------------------------------------------------------------------
def _mono_kernel(C, Cq, N, x_ref, w_ref, b_ref, gamma_ref, o_ref):
    x = x_ref[...]                                     # (C, N) bf16
    # Fused projection: one bf16 matmul for V, K, Q (stacked [wv; wk; wq]).
    proj = jnp.dot(w_ref[...], x,
                   preferred_element_type=jnp.float32) + b_ref[...]
    v = proj[:C]                                       # (C,  N) f32
    k = proj[C:C + Cq]                                 # (Cq, N) f32
    q = proj[C + Cq:]                                  # (Cq, N) f32

    # l2_norm over the channel axis (torch dim=-2): per-spatial-column norm.
    q = q * lax.rsqrt(jnp.sum(q * q, axis=0, keepdims=True))
    k = k * lax.rsqrt(jnp.sum(k * k, axis=0, keepdims=True))

    # tailor_sum = 1 / (N + Q^T @ (sum_n K + eps))       -> (1, N)
    ksum = jnp.sum(k, axis=1, keepdims=True) + EPS       # (Cq, 1)
    tailor = pl.reciprocal(
        jnp.float32(N) + jnp.sum(q * ksum, axis=0, keepdims=True),
        approx=True)                                     # (1, N)

    vsum = jnp.sum(v, axis=1, keepdims=True)             # (C, 1)

    # mat_t = V @ K^T (contract N)                       -> (C, Cq)
    mat_t = lax.dot_general(v, k, (((1,), (1,)), ((), ())),
                            preferred_element_type=jnp.float32)
    # qm = mat_t @ q : canonical (M,K)x(K,N) matmul       -> (C, N)
    qm = jnp.dot(mat_t, q, preferred_element_type=jnp.float32)

    weight_value = (vsum + qm) * tailor                   # (C, N)
    gamma = gamma_ref[0]
    o_ref[...] = (x.astype(jnp.float32) + gamma * weight_value).astype(o_ref.dtype)


def _pam_monolithic(xf, w_all, b_all, gamma, C, Cq, N, out_dtype, mono_bytes):
    B = xf.shape[0]
    cp_kwargs = {"dimension_semantics": ("parallel",)}
    if mono_bytes > (24 << 20):
        cp_kwargs["vmem_limit_bytes"] = int(min(mono_bytes * 3 // 2, 100 << 20))
    return pl.pallas_call(
        functools.partial(_mono_kernel, C, Cq, N),
        out_shape=jax.ShapeDtypeStruct((B, C, N), out_dtype),
        grid_spec=pltpu.PrefetchScalarGridSpec(
            num_scalar_prefetch=0,
            grid=(B,),
            in_specs=[
                pl.BlockSpec((None, C, N), lambda b: (b, 0, 0)),        # x
                pl.BlockSpec((C + 2 * Cq, C), lambda b: (0, 0)),        # [wv;wk;wq]
                pl.BlockSpec((C + 2 * Cq, 1), lambda b: (0, 0)),        # [bv;bk;bq]
                pl.BlockSpec(memory_space=pltpu.MemorySpace.SMEM),      # gamma
            ],
            out_specs=pl.BlockSpec((None, C, N), lambda b: (b, 0, 0)),
        ),
        compiler_params=pltpu.CompilerParams(**cp_kwargs),
    )(xf, w_all, b_all, gamma)


# ----------------------------------------------------------------------------
# Two-phase N-tiled path (bounded VMEM, (B, N-tile) parallel grid).
# ----------------------------------------------------------------------------
def _stats_kernel(C, x_ref, w_ref, b_ref, vsum_ref, ksum_ref, mat_ref):
    n = pl.program_id(1)
    x = x_ref[...]                                       # (C, TN) bf16
    # Fused [wv; wk] projection (single bf16 matmul).
    proj = jnp.dot(w_ref[...], x,
                   preferred_element_type=jnp.float32) + b_ref[...]
    v = proj[:C]                                         # (C,  TN)
    k = proj[C:]                                         # (Cq, TN)
    k = k * lax.rsqrt(jnp.sum(k * k, axis=0, keepdims=True))

    @pl.when(n == 0)
    def _():
        vsum_ref[...] = jnp.zeros_like(vsum_ref)
        ksum_ref[...] = jnp.zeros_like(ksum_ref)
        mat_ref[...] = jnp.zeros_like(mat_ref)

    vsum_ref[...] += jnp.sum(v, axis=1, keepdims=True)            # (C, 1)
    ksum_ref[...] += jnp.sum(k, axis=1, keepdims=True)            # (Cq, 1)
    # mat_t += V @ K^T (contract the tile's N columns)            -> (C, Cq)
    mat_ref[...] += lax.dot_general(v, k, (((1,), (1,)), ((), ())),
                                    preferred_element_type=jnp.float32)


def _apply_kernel(N, x_ref, wq_ref, bq_ref, vsum_ref, ksum_ref, mat_ref,
                  gamma_ref, o_ref):
    x = x_ref[...]                                       # (C, TN) bf16
    q = jnp.dot(wq_ref[...], x,
                preferred_element_type=jnp.float32) + bq_ref[...]
    q = q * lax.rsqrt(jnp.sum(q * q, axis=0, keepdims=True))      # (Cq, TN)

    ksum = ksum_ref[...] + EPS                                    # (Cq, 1)
    tailor = pl.reciprocal(
        jnp.float32(N) + jnp.sum(q * ksum, axis=0, keepdims=True),
        approx=True)                                              # (1, TN)

    # qm = mat_t @ q : canonical matmul (no transpose needed)     -> (C, TN)
    qm = jnp.dot(mat_ref[...], q, preferred_element_type=jnp.float32)
    weight_value = (vsum_ref[...] + qm) * tailor
    o_ref[...] = (x.astype(jnp.float32)
                  + gamma_ref[0] * weight_value).astype(o_ref.dtype)


def _pam_tiled(xf, w_kv, b_kv, wq, bq2, gamma, C, Cq, N, TN, out_dtype):
    B = xf.shape[0]
    NT = N // TN

    # Phase 1: accumulate vsum, ksum, mat_t over N tiles (reduction axis last).
    vsum, ksum, mat_t = pl.pallas_call(
        functools.partial(_stats_kernel, C),
        out_shape=(
            jax.ShapeDtypeStruct((B, C, 1), jnp.float32),
            jax.ShapeDtypeStruct((B, Cq, 1), jnp.float32),
            jax.ShapeDtypeStruct((B, C, Cq), jnp.float32),
        ),
        grid_spec=pltpu.PrefetchScalarGridSpec(
            num_scalar_prefetch=0,
            grid=(B, NT),
            in_specs=[
                pl.BlockSpec((None, C, TN), lambda b, n: (b, 0, n)),    # x
                pl.BlockSpec((C + Cq, C), lambda b, n: (0, 0)),         # [wv;wk]
                pl.BlockSpec((C + Cq, 1), lambda b, n: (0, 0)),         # [bv;bk]
            ],
            out_specs=(
                pl.BlockSpec((None, C, 1), lambda b, n: (b, 0, 0)),
                pl.BlockSpec((None, Cq, 1), lambda b, n: (b, 0, 0)),
                pl.BlockSpec((None, C, Cq), lambda b, n: (b, 0, 0)),
            ),
        ),
        compiler_params=pltpu.CompilerParams(
            dimension_semantics=("parallel", "arbitrary")),
    )(xf, w_kv, b_kv)

    # Phase 2: per (batch, N-tile), recompute q and emit the output tile.
    # Both grid axes are parallel -> v7x can shard across its 2 TensorCores.
    out = pl.pallas_call(
        functools.partial(_apply_kernel, N),
        out_shape=jax.ShapeDtypeStruct((B, C, N), out_dtype),
        grid_spec=pltpu.PrefetchScalarGridSpec(
            num_scalar_prefetch=0,
            grid=(B, NT),
            in_specs=[
                pl.BlockSpec((None, C, TN), lambda b, n: (b, 0, n)),    # x
                pl.BlockSpec((Cq, C), lambda b, n: (0, 0)),             # wq
                pl.BlockSpec((Cq, 1), lambda b, n: (0, 0)),             # bq
                pl.BlockSpec((None, C, 1), lambda b, n: (b, 0, 0)),     # vsum
                pl.BlockSpec((None, Cq, 1), lambda b, n: (b, 0, 0)),    # ksum
                pl.BlockSpec((None, C, Cq), lambda b, n: (b, 0, 0)),    # mat_t
                pl.BlockSpec(memory_space=pltpu.MemorySpace.SMEM),      # gamma
            ],
            out_specs=pl.BlockSpec((None, C, TN), lambda b, n: (b, 0, n)),
        ),
        compiler_params=pltpu.CompilerParams(
            dimension_semantics=("parallel", "parallel")),
    )(xf, wq, bq2, vsum, ksum, mat_t, gamma)
    return out


# ----------------------------------------------------------------------------
# Wrapper
# ----------------------------------------------------------------------------
def _pick_tile_n(N, max_tile=2048):
    """Largest lane-dense (multiple of 128) tile dividing N, capped at max_tile."""
    if N <= max_tile:
        return N
    t = (max_tile // 128) * 128
    while t >= 128:
        if N % t == 0:
            return t
        t -= 128
    return N  # fall back: full axis (satisfies the full-dim BlockSpec rule)


def pam_forward(x, wq, bq, wk, bk, wv, bv, gamma, *, force_tiled=False,
                tile_n=None):
    B, C, W, H = x.shape
    assert W == H, "the PyTorch module's final .view only type-checks for W==H"
    N = W * H
    Cq = wq.shape[0]

    # bf16 HBM traffic for the dominant (B, C, N) input; compute accumulates
    # in f32.  Output kept f32 (switch out_dtype to bf16 if the caller allows).
    xf = x.reshape(B, C, N).astype(jnp.bfloat16)
    gamma = gamma.reshape(1).astype(jnp.float32)
    out_dtype = jnp.float32

    # Rough per-grid-step VMEM footprint of the monolithic path.
    mono_bytes = (2 * C * N * 2            # x tile bf16, double-buffered
                  + 2 * C * N * 4          # out tile f32, double-buffered
                  + (C + 2 * Cq) * N * 4   # fused projection intermediate
                  + 4 * C * N)             # temporaries headroom
    use_tiled = force_tiled or mono_bytes > (40 << 20)

    if not use_tiled:
        w_all = jnp.concatenate([wv, wk, wq], axis=0).astype(jnp.bfloat16)
        b_all = jnp.concatenate([bv, bk, bq], axis=0).reshape(-1, 1).astype(
            jnp.float32)
        out_flat = _pam_monolithic(xf, w_all, b_all, gamma, C, Cq, N,
                                   out_dtype, mono_bytes)
    else:
        TN = tile_n if tile_n is not None else _pick_tile_n(N)
        assert N % TN == 0 and (TN % 128 == 0 or TN == N)
        w_kv = jnp.concatenate([wv, wk], axis=0).astype(jnp.bfloat16)
        b_kv = jnp.concatenate([bv, bk], axis=0).reshape(-1, 1).astype(
            jnp.float32)
        out_flat = _pam_tiled(xf, w_kv, b_kv, wq.astype(jnp.bfloat16),
                              bq.reshape(-1, 1).astype(jnp.float32),
                              gamma, C, Cq, N, TN, out_dtype)

    # torch: weight_value.view(B, C, height, width); with W == H this is the
    # same reinterpretation of the flat spatial axis.
    return out_flat.reshape(B, C, W, H)


def pam_reference(x, wq, bq, wk, bk, wv, bv, gamma):
    """Pure-JAX (f32) transcription of the PyTorch forward, for verification."""
    B, C, W, H = x.shape
    N = W * H
    xf = x.reshape(B, C, N)
    Q = jnp.einsum('oc,bcn->bon', wq, xf) + bq[None, :, None]
    K = jnp.einsum('oc,bcn->bon', wk, xf) + bk[None, :, None]
    V = jnp.einsum('oc,bcn->bon', wv, xf) + bv[None, :, None]
    Q = Q / jnp.linalg.norm(Q, axis=-2, keepdims=True)
    K = K / jnp.linalg.norm(K, axis=-2, keepdims=True)
    Qp = jnp.transpose(Q, (0, 2, 1))                          # (B, N, Cq)
    tailor = 1.0 / (N + jnp.einsum('bnc,bc->bn', Qp, jnp.sum(K, -1) + EPS))
    vsum = jnp.sum(V, -1)[:, :, None]                         # (B, C, 1)
    mat = jnp.einsum('bmn,bcn->bmc', K, V)                    # (B, Cq, C)
    msum = vsum + jnp.einsum('bnm,bmc->bcn', Qp, mat)         # (B, C, N)
    wval = msum * tailor[:, None, :]
    return (xf + gamma[0] * wval).reshape(B, C, W, H)


if __name__ == "__main__":
    B, C, W, H = 2, 16, 16, 16          # in_places=16, scale=8 -> Cq=2
    scale = 8
    Cq = C // scale

    key = jax.random.PRNGKey(0)
    ks = jax.random.split(key, 8)
    x = jax.random.normal(ks[0], (B, C, W, H), jnp.float32)
    wq = jax.random.normal(ks[1], (Cq, C), jnp.float32) * 0.1
    bq = jax.random.normal(ks[2], (Cq,), jnp.float32) * 0.1
    wk = jax.random.normal(ks[3], (Cq, C), jnp.float32) * 0.1
    bk = jax.random.normal(ks[4], (Cq,), jnp.float32) * 0.1
    wv = jax.random.normal(ks[5], (C, C), jnp.float32) * 0.1
    bv = jax.random.normal(ks[6], (C,), jnp.float32) * 0.1
    # Module inits gamma to 0 (output == x); use a nonzero value so the
    # attention path is actually exercised/verified.
    gamma = jnp.array([0.5], jnp.float32)

    ref = pam_reference(x, wq, bq, wk, bk, wv, bv, gamma)

    # Path 1: monolithic single-pass kernel (small slab fits VMEM).
    out = pam_forward(x, wq, bq, wk, bk, wv, bv, gamma)
    jax.block_until_ready(out)
    assert out.shape == x.shape
    if not jnp.allclose(out, ref, atol=2e-2, rtol=2e-2):
        raise AssertionError("monolithic Pallas kernel does not match reference")

    # Path 2: force the N-tiled two-phase path (what v7x / large maps use);
    # tile_n=128 -> 2 spatial tiles, exercising the accumulator grid axis.
    out_tiled = pam_forward(x, wq, bq, wk, bk, wv, bv, gamma,
                            force_tiled=True, tile_n=128)
    jax.block_until_ready(out_tiled)
    if not jnp.allclose(out_tiled, ref, atol=2e-2, rtol=2e-2):
        raise AssertionError("tiled Pallas kernels do not match reference")

    print("KERNEL_OK")
</pallas_src>

<mosaic_0001>
module attributes {stable_mosaic.version = 11 : i64} {
  func.func @_mono_kernel(%arg0: i32, %arg1: memref<1x16x256xbf16, #tpu.memory_space<vmem>>, %arg2: memref<20x16xbf16, #tpu.memory_space<vmem>>, %arg3: memref<20x1xf32, #tpu.memory_space<vmem>>, %arg4: memref<1xf32, #tpu.memory_space<smem>>, %arg5: memref<1x16x256xf32, #tpu.memory_space<vmem>>) attributes {dimension_semantics = [#tpu.dimension_semantics<parallel>], iteration_bounds = array<i64: 2>, scalar_prefetch = 0 : i64, scratch_operands = 0 : i64, tpu.core_type = #tpu.core_type<tc>, window_params = [{transform_indices = @transform_0, window_bounds = array<i64: 1, 16, 256>}, {pipeline_mode = #tpu.pipeline_mode<synchronous>, transform_indices = @transform_1, window_bounds = array<i64: 20, 16>}, {pipeline_mode = #tpu.pipeline_mode<synchronous>, transform_indices = @transform_2, window_bounds = array<i64: 20, 1>}, {transform_indices = @transform_3, window_bounds = array<i64: 1>}, {transform_indices = @transform_4, window_bounds = array<i64: 1, 16, 256>}]} {
    %c0 = arith.constant 0 : index
    %c0_0 = arith.constant 0 : index
    %c0_1 = arith.constant 0 : index
    %0 = vector.load %arg1[%c0, %c0_0, %c0_1] : memref<1x16x256xbf16, #tpu.memory_space<vmem>>, vector<1x16x256xbf16>
    %1 = vector.shape_cast %0 : vector<1x16x256xbf16> to vector<16x256xbf16>
    %c0_2 = arith.constant 0 : index
    %c0_3 = arith.constant 0 : index
    %2 = vector.load %arg2[%c0_2, %c0_3] : memref<20x16xbf16, #tpu.memory_space<vmem>>, vector<20x16xbf16>
    %cst = arith.constant dense<0.000000e+00> : vector<20x256xf32>
    %3 = tpu.matmul %2, %1, %cst {dimension_numbers = #tpu.dot_dimension_numbers<[1], [0], [0], [1], [0, 0, 1, 1], [], []>} : vector<20x16xbf16>, vector<16x256xbf16>, vector<20x256xf32> -> vector<20x256xf32>
    %c0_4 = arith.constant 0 : index
    %c0_5 = arith.constant 0 : index
    %4 = vector.load %arg3[%c0_4, %c0_5] : memref<20x1xf32, #tpu.memory_space<vmem>>, vector<20x1xf32>
    %5 = vector.broadcast %4 : vector<20x1xf32> to vector<20x256xf32>
    %6 = arith.addf %3, %5 : vector<20x256xf32>
    %7 = vector.extract_strided_slice %6 {offsets = [0, 0], sizes = [16, 256], strides = [1, 1]} : vector<20x256xf32> to vector<16x256xf32>
    %8 = vector.extract_strided_slice %6 {offsets = [16, 0], sizes = [2, 256], strides = [1, 1]} : vector<20x256xf32> to vector<2x256xf32>
    %9 = vector.extract_strided_slice %6 {offsets = [18, 0], sizes = [2, 256], strides = [1, 1]} : vector<20x256xf32> to vector<2x256xf32>
    %10 = arith.mulf %9, %9 : vector<2x256xf32>
    %cst_6 = arith.constant dense<0.000000e+00> : vector<256xf32>
    %11 = vector.multi_reduction <add>, %10, %cst_6 [0] : vector<2x256xf32> to vector<256xf32>
    %12 = vector.shape_cast %11 : vector<256xf32> to vector<1x256xf32>
    %13 = math.rsqrt %12 : vector<1x256xf32>
    %14 = vector.broadcast %13 : vector<1x256xf32> to vector<2x256xf32>
    %15 = arith.mulf %9, %14 : vector<2x256xf32>
    %16 = arith.mulf %8, %8 : vector<2x256xf32>
    %cst_7 = arith.constant dense<0.000000e+00> : vector<256xf32>
    %17 = vector.multi_reduction <add>, %16, %cst_7 [0] : vector<2x256xf32> to vector<256xf32>
    %18 = vector.shape_cast %17 : vector<256xf32> to vector<1x256xf32>
    %19 = math.rsqrt %18 : vector<1x256xf32>
    %20 = vector.broadcast %19 : vector<1x256xf32> to vector<2x256xf32>
    %21 = arith.mulf %8, %20 : vector<2x256xf32>
    %cst_8 = arith.constant dense<0.000000e+00> : vector<2xf32>
    %22 = vector.multi_reduction <add>, %21, %cst_8 [1] : vector<2x256xf32> to vector<2xf32>
    %23 = vector.shape_cast %22 : vector<2xf32> to vector<2x1xf32>
    %cst_9 = arith.constant 9.99999997E-7 : f32
    %24 = vector.broadcast %cst_9 : f32 to vector<2x1xf32>
    %25 = arith.addf %23, %24 : vector<2x1xf32>
    %26 = vector.broadcast %25 : vector<2x1xf32> to vector<2x256xf32>
    %27 = arith.mulf %15, %26 : vector<2x256xf32>
    %cst_10 = arith.constant dense<0.000000e+00> : vector<256xf32>
    %28 = vector.multi_reduction <add>, %27, %cst_10 [0] : vector<2x256xf32> to vector<256xf32>
    %29 = vector.shape_cast %28 : vector<256xf32> to vector<1x256xf32>
    %cst_11 = arith.constant 2.560000e+02 : f32
    %30 = vector.broadcast %cst_11 : f32 to vector<1x256xf32>
    %31 = arith.addf %30, %29 : vector<1x256xf32>
    %32 = tpu.reciprocal %31 {approx = true} : vector<1x256xf32> -> vector<1x256xf32>
    %cst_12 = arith.constant dense<0.000000e+00> : vector<16xf32>
    %33 = vector.multi_reduction <add>, %7, %cst_12 [1] : vector<16x256xf32> to vector<16xf32>
    %34 = vector.shape_cast %33 : vector<16xf32> to vector<16x1xf32>
    %cst_13 = arith.constant dense<0.000000e+00> : vector<16x2xf32>
    %35 = tpu.matmul %7, %21, %cst_13 {dimension_numbers = #tpu.dot_dimension_numbers<[1], [1], [0], [0], [0, 0, 1, 0], [], []>} : vector<16x256xf32>, vector<2x256xf32>, vector<16x2xf32> -> vector<16x2xf32>
    %cst_14 = arith.constant dense<0.000000e+00> : vector<16x256xf32>
    %36 = tpu.matmul %35, %15, %cst_14 {dimension_numbers = #tpu.dot_dimension_numbers<[1], [0], [0], [1], [0, 0, 1, 1], [], []>} : vector<16x2xf32>, vector<2x256xf32>, vector<16x256xf32> -> vector<16x256xf32>
    %37 = vector.broadcast %34 : vector<16x1xf32> to vector<16x256xf32>
    %38 = arith.addf %37, %36 : vector<16x256xf32>
    %39 = vector.broadcast %32 : vector<1x256xf32> to vector<16x256xf32>
    %40 = arith.mulf %38, %39 : vector<16x256xf32>
    %c0_15 = arith.constant 0 : index
    %41 = memref.load %arg4[%c0_15] : memref<1xf32, #tpu.memory_space<smem>>
    %42 = arith.extf %1 : vector<16x256xbf16> to vector<16x256xf32>
    %43 = vector.broadcast %41 : f32 to vector<16x256xf32>
    %44 = arith.mulf %43, %40 : vector<16x256xf32>
    %45 = arith.addf %42, %44 : vector<16x256xf32>
    %c0_16 = arith.constant 0 : index
    %c0_17 = arith.constant 0 : index
    %c0_18 = arith.constant 0 : index
    %46 = vector.load %arg5[%c0_16, %c0_17, %c0_18] : memref<1x16x256xf32, #tpu.memory_space<vmem>>, vector<1x16x256xf32>
    %47 = vector.shape_cast %46 : vector<1x16x256xf32> to vector<16x256xf32>
    %48 = vector.shape_cast %45 : vector<16x256xf32> to vector<1x16x256xf32>
    tpu.vector_store %arg5[%c0_16, %c0_17, %c0_18], %48 {strides = array<i32>} : memref<1x16x256xf32, #tpu.memory_space<vmem>>, vector<1x16x256xf32>,
    return
  }
  func.func @transform_0(%arg0: i32) -> (i32, i32, i32) {
    %c0_i32 = arith.constant 0 : i32
    %c0_i32_0 = arith.constant 0 : i32
    %c0_i32_1 = arith.constant 0 : i32
    return %arg0, %c0_i32, %c0_i32_0 : i32, i32, i32
  }
  func.func @transform_1(%arg0: i32) -> (i32, i32) {
    %c0_i32 = arith.constant 0 : i32
    %c0_i32_0 = arith.constant 0 : i32
    %c0_i32_1 = arith.constant 0 : i32
    return %c0_i32, %c0_i32_0 : i32, i32
  }
  func.func @transform_2(%arg0: i32) -> (i32, i32) {
    %c0_i32 = arith.constant 0 : i32
    %c0_i32_0 = arith.constant 0 : i32
    %c0_i32_1 = arith.constant 0 : i32
    return %c0_i32, %c0_i32_0 : i32, i32
  }
  func.func @transform_3(%arg0: i32) -> i32 {
    %c0_i32 = arith.constant 0 : i32
    %c0_i32_0 = arith.constant 0 : i32
    return %c0_i32 : i32
  }
  func.func @transform_4(%arg0: i32) -> (i32, i32, i32) {
    %c0_i32 = arith.constant 0 : i32
    %c0_i32_0 = arith.constant 0 : i32
    %c0_i32_1 = arith.constant 0 : i32
    return %arg0, %c0_i32, %c0_i32_0 : i32, i32, i32
  }
}

</mosaic_0001>

<llo_original>
// kernel: tpu_custom_call.1
$region0: #{tpu_custom_call.1}
  #allocation0 [shape = 'u32[]', space=smem, size = 0x4, offset = 0x4, fixed_abs, tag = 'smem constant byte address 0x4 - core index']
  #allocation1 [shape = 'u32[144,128]{1,0:T(1,128)}', space=vmem, size = 0x12000, scoped, tag = 'internal scratch']
  #allocation2 [shape = 'f32[1]{0:T(128)S(6)}', space=smem, size = 0x200, scoped, tag = 'scoped memory for tpu_custom_call.1']
  %s0 = inlined_call_operand.vmem [shape: bf16[2,16,256], index: 0, kind: input, shape index: {}]
  %s1 = inlined_call_operand.vmem [shape: bf16[20,16], index: 1, kind: input, shape index: {}]
  %s2 = inlined_call_operand.vmem [shape: f32[20,1], index: 2, kind: input, shape index: {}]
  %s3 = inlined_call_operand.<no memory space> [shape: f32[1], index: 3, kind: input, shape index: {}]
  %s4 = inlined_call_operand.hbm [shape: f32[2,16,256], index: 4, kind: output, shape index: {}]
  %s5 = sld [smem:[#allocation0]]
  $region49: #{tpu_custom_call.1} parent=0
    _
  %s7 = ssub.s32 1, %s5
  %s8 = scalar_select 0, %s7, %s5
  %9 = sst [smem:[#allocation2]] %s3
  $region1: #{tpu_custom_call.1} parent=0
    #allocation3 [shape = 'u8[32768]{0}', space=vmem, size = 0x8000, scoped, tag = 'output window, operand 0']
    #allocation4 [shape = 's32[2]{0}', space=sflag, size = 0x8, scoped, tag = 'scoped memory for tpu_custom_call.1']
    %10 = vsyncpa [#allocation4], 0
    %s11 = scalar_lea.sflag [#allocation4], 1
    %12 = vsyncpa %s11, 0
    loop: start=0, step=1, limit=4
    $region2: #{tpu_custom_call.1} parent=1 // loop_pre_header
      _
    $region3: #{tpu_custom_call.1} parent=1 // loop_header
      %s14 = sphi 0, %s18
      %p15 = scmp.ge.s32.totalorder %s14, 4
      %s24 = sphi 0, %s26
      %s27 = sphi 0, %s24
      %s28 = sphi 0, %s27
      %s44 = sphi 0, %s28
      %s48 = sphi 0, %s48
      %s50 = sphi 0, %s48
      %s51 = sphi 0, %s50
      %s65 = sphi 0, %s51
      %s69 = sphi 0, %s69
      %s71 = sphi 0, %s69
      %s72 = sphi 0, %s71
      %s86 = sphi 0, %s72
      %s90 = sphi 0, %s90
      %s92 = sphi 0, %s90
      %s93 = sphi 0, %s92
      %s107 = sphi 0, %s93
      %s113 = sphi 0, %s115
      %s116 = sphi 0, %s113
      %s117 = sphi 0, %s116
      %s133 = sphi 0, %s117
    $region4: #{tpu_custom_call.1} parent=1 // loop_header_branch
      %17 = sbr.rel (%p15) target = $region8
    $region5: #{tpu_custom_call.1} parent=1 // loop_body
      %s19 = ssub.s32 %s14, 1
      %s20 = ssub.s32 %s14, 2
      %s21 = sadd.s32 %s14, 1
      %s22 = ssub.s32 %s14, %s21
      %p23 = scmp.eq.s32.totalorder %s22, 0
      %s25 = sadd.s32 %s24, 1
      %s26 = scalar_select %p23, %s24, %s25
      %p29 = pneg %p23
      %p30 = scmp.eq.s32.totalorder %s14, 1
      %p31 = por %p29, %p30
      %p32 = scmp.ne.s32.totalorder %s24, %s27
      %p33 = scmp.eq.s32.totalorder %s14, 0
      %p34 = por %p32, %p33
      %p35 = scmp.ne.s32.totalorder %s24, %s27
      %p36 = scmp.eq.s32.totalorder %s19, 1
      %p37 = por %p35, %p36
      %p38 = scmp.ne.s32.totalorder %s27, %s28
      %p39 = scmp.eq.s32.totalorder %s19, 0
      %p40 = por %p38, %p39
      %p41 = scmp.ne.s32.totalorder %s27, %s28
      %p42 = scmp.eq.s32.totalorder %s20, 1
      %p43 = por %p41, %p42
      %p45 = scmp.ne.s32.totalorder %s28, %s44
      %p46 = scmp.eq.s32.totalorder %s20, 0
      %p47 = por %p45, %p46
      %s49 = sadd.s32 %s48, 1
      %p52 = scmp.eq.s32.totalorder %s14, 1
      %p53 = scmp.ne.s32.totalorder %s48, %s50
      %p54 = scmp.eq.s32.totalorder %s14, 0
      %p55 = por %p53, %p54
      %p56 = scmp.ne.s32.totalorder %s48, %s50
      %p57 = scmp.eq.s32.totalorder %s19, 1
      %p58 = por %p56, %p57
      %p59 = scmp.ne.s32.totalorder %s50, %s51
      %p60 = scmp.eq.s32.totalorder %s19, 0
      %p61 = por %p59, %p60
      %p62 = scmp.ne.s32.totalorder %s50, %s51
      %p63 = scmp.eq.s32.totalorder %s20, 1
      %p64 = por %p62, %p63
      %p66 = scmp.ne.s32.totalorder %s51, %s65
      %p67 = scmp.eq.s32.totalorder %s20, 0
      %p68 = por %p66, %p67
      %s70 = sadd.s32 %s69, 1
      %p73 = scmp.eq.s32.totalorder %s14, 1
      %p74 = scmp.ne.s32.totalorder %s69, %s71
      %p75 = scmp.eq.s32.totalorder %s14, 0
      %p76 = por %p74, %p75
      %p77 = scmp.ne.s32.totalorder %s69, %s71
      %p78 = scmp.eq.s32.totalorder %s19, 1
      %p79 = por %p77, %p78
      %p80 = scmp.ne.s32.totalorder %s71, %s72
      %p81 = scmp.eq.s32.totalorder %s19, 0
      %p82 = por %p80, %p81
      %p83 = scmp.ne.s32.totalorder %s71, %s72
      %p84 = scmp.eq.s32.totalorder %s20, 1
      %p85 = por %p83, %p84
      %p87 = scmp.ne.s32.totalorder %s72, %s86
      %p88 = scmp.eq.s32.totalorder %s20, 0
      %p89 = por %p87, %p88
      %s91 = sadd.s32 %s90, 1
      %p94 = scmp.eq.s32.totalorder %s14, 1
      %p95 = scmp.ne.s32.totalorder %s90, %s92
      %p96 = scmp.eq.s32.totalorder %s14, 0
      %p97 = por %p95, %p96
      %p98 = scmp.ne.s32.totalorder %s90, %s92
      %p99 = scmp.eq.s32.totalorder %s19, 1
      %p100 = por %p98, %p99
      %p101 = scmp.ne.s32.totalorder %s92, %s93
      %p102 = scmp.eq.s32.totalorder %s19, 0
      %p103 = por %p101, %p102
      %p104 = scmp.ne.s32.totalorder %s92, %s93
      %p105 = scmp.eq.s32.totalorder %s20, 1
      %p106 = por %p104, %p105
      %p108 = scmp.ne.s32.totalorder %s93, %s107
      %p109 = scmp.eq.s32.totalorder %s20, 0
      %p110 = por %p108, %p109
      %s111 = ssub.s32 %s14, %s21
      %p112 = scmp.eq.s32.totalorder %s111, 0
      %s114 = sadd.s32 %s113, 1
      %s115 = scalar_select %p112, %s113, %s114
      %p118 = pneg %p112
      %p119 = scmp.eq.s32.totalorder %s14, 1
      %p120 = por %p118, %p119
      %p121 = scmp.ne.s32.totalorder %s113, %s116
      %p122 = scmp.eq.s32.totalorder %s14, 0
      %p123 = por %p121, %p122
      %p124 = scmp.ne.s32.totalorder %s113, %s116
      %p125 = scmp.eq.s32.totalorder %s19, 1
      %p126 = por %p124, %p125
      %p127 = scmp.ne.s32.totalorder %s116, %s117
      %p128 = scmp.eq.s32.totalorder %s19, 0
      %p129 = por %p127, %p128
      %p130 = scmp.ne.s32.totalorder %s116, %s117
      %p131 = scmp.eq.s32.totalorder %s20, 1
      %p132 = por %p130, %p131
      %p134 = scmp.ne.s32.totalorder %s117, %s133
      %p135 = scmp.eq.s32.totalorder %s20, 0
      %p136 = por %p134, %p135
      %p137 = scmp.le.s32.totalorder 1, %s14
      %p138 = scmp.lt.s32.totalorder %s14, 3
      %p139 = pnand %p137, %p138
      %p140 = pneg %p139
      // Predicated region
      $region9: #{tpu_custom_call.1} parent=5 // pred_check
        _
      $region10: #{tpu_custom_call.1} parent=5 // pred_check_branch
        %142 = sbr.rel (%p139) target = $region12
      $region11: #{tpu_custom_call.1} parent=5 // pred_region
        %s143 = ssub.s32 %s14, 1
        // Predicated region
        $region13: #{tpu_custom_call.1} parent=11 // pred_check
          %p144 = pneg %p61
        $region14: #{tpu_custom_call.1} parent=11 // pred_check_branch
          %146 = sbr.rel (%p144) target = $region16
        $region15: #{tpu_custom_call.1} parent=11 // pred_region
          _
        $region16: #{tpu_custom_call.1} parent=11 // pred_fallthru
          _
        // Predicated region
        $region17: #{tpu_custom_call.1} parent=11 // pred_check
          %p147 = pneg %p82
        $region18: #{tpu_custom_call.1} parent=11 // pred_check_branch
          %149 = sbr.rel (%p147) target = $region20
        $region19: #{tpu_custom_call.1} parent=11 // pred_region
          _
        $region20: #{tpu_custom_call.1} parent=11 // pred_fallthru
          _
        // Predicated region
        $region21: #{tpu_custom_call.1} parent=11 // pred_check
          %p150 = pneg %p103
        $region22: #{tpu_custom_call.1} parent=11 // pred_check_branch
          %152 = sbr.rel (%p150) target = $region24
        $region23: #{tpu_custom_call.1} parent=11 // pred_region
          _
        $region24: #{tpu_custom_call.1} parent=11 // pred_fallthru
          _
      $region12: #{tpu_custom_call.1} parent=5 // pred_fallthru
        _
      %p153 = scmp.lt.s32.totalorder %s14, 2
      // Predicated region
      $region25: #{tpu_custom_call.1} parent=5 // pred_check
        %p154 = pneg %p153
      $region26: #{tpu_custom_call.1} parent=5 // pred_check_branch
        %156 = sbr.rel (%p154) target = $region28
      $region27: #{tpu_custom_call.1} parent=5 // pred_region
        // Predicated region
        $region29: #{tpu_custom_call.1} parent=27 // pred_check
          %p157 = pneg %p34
        $region30: #{tpu_custom_call.1} parent=27 // pred_check_branch
          %159 = sbr.rel (%p157) target = $region32
        $region31: #{tpu_custom_call.1} parent=27 // pred_region
          %p160 = scmp.lt.s32.totalorder %s14, 1
          %s161 = scalar_select %p160, %s14, 1
          %s162 = smul.addr %s161, 4
          %s163 = smul.addr %s162, 4
          %s164 = scalar_lea.vmem %s0, %s163
        $region32: #{tpu_custom_call.1} parent=27 // pred_fallthru
          _
      $region28: #{tpu_custom_call.1} parent=5 // pred_fallthru
        _
      %p165 = scmp.le.s32.totalorder 1, %s14
      %p166 = scmp.lt.s32.totalorder %s14, 3
      %p167 = pnand %p165, %p166
      %p168 = pneg %p167
      // Predicated region
      $region33: #{tpu_custom_call.1} parent=5 // pred_check
        _
      $region34: #{tpu_custom_call.1} parent=5 // pred_check_branch
        %170 = sbr.rel (%p167) target = $region36
      $region35: #{tpu_custom_call.1} parent=5 // pred_region
        %s171 = ssub.s32 %s14, 1
        %p172 = scmp.lt.s32.totalorder %s19, 1
        %s173 = scalar_select %p172, %s19, 1
        %s174 = smul.addr %s173, 4
        %s175 = smul.addr %s174, 4
        %s176 = scalar_lea.vmem %s0, %s175
        %p177 = pneg %p40
        %p178 = pneg %p37
        %p179 = pneg %p61
        %p180 = pneg %p58
        %p181 = pneg %p82
        %p182 = pneg %p79
        %p183 = pneg %p103
        %p184 = pneg %p100
        %p185 = pneg %p129
        %p186 = pneg %p126
        %s187 = sand.u32 %s116, 1
        %s188 = scalar_lea.sflag [#allocation4], %s187
        %s189 = sand.u32 %s116, 1
        %s190 = smul.addr %s189, 32
        %s191 = scalar_lea.vmem [#allocation3], %s190
        %p192 = scmp.lt.s32.totalorder %s19, 1
        %s193 = scalar_select %p192, %s19, 1
        %s194 = smul.addr %s193, 4
        %s195 = smul.addr %s194, 4
        %s196 = scalar_lea.vmem %s0, %s195
        %v198 = vld [vmem:[%s196] sm:$0xff]
        %v199 = vld [vmem:[%s196 + $0x8] sm:$0xff]
        %v200 = vld [vmem:[%s1] sm:$0xf]
        %v201 = vld [vmem:[%s1 + $0x4] sm:$0xf]
        %v202 = vld [vmem:[%s1 + $0x8] sm:$0x3]
        %v203 = vld [vmem:[%s2] sm:$0xff]
        %v204 = vld [vmem:[%s2 + $0x8] sm:$0xff]
        %v205 = vld [vmem:[%s2 + $0x10] sm:$0xf]
        %207 = vset.pattern.permute.xlu0 0
        %208 = vperm.xlu0 %207, %v203
        %v209 = vpop.permute.xlu0 %208
        %212 = vset.pattern.permute.xlu0 0
        %213 = vperm.xlu0 %212, %v204
        %v214 = vpop.permute.xlu0 %213
        %217 = vset.pattern.permute.xlu0 0
        %218 = vperm.xlu0 %217, %v205
        %v219 = vpop.permute.xlu0 %218
        %v224 = vunpack.c.l.b16 %v200
        %v225 = vunpack.c.l.b16 %v201
        %v226 = vunpack.c.l.b16 %v202
        %v227 = vpack.c.b16 %v225, %v224
        %v228 = vpack.c.b16 %v226, %v226
        %v231 = vunpack.c.l.b16 %v198
        %v232 = vunpack.c.h.b16 %v198
        %v233 = vunpack.c.l.b16 %v199
        %v234 = vunpack.c.h.b16 %v199
        %v235 = vpack.c.b16 %v233, %v231
        %v236 = vpack.c.b16 %v234, %v232
        %vm239 = vcmask 130048
        %v241 = vsel %vm239, %v227, 0
        %v244 = vsel %vm239, %v228, 0
        %246 = vmatprep.subr.bf16.mxu0 0
        %247 = vmatpush1.bf16.msra.mxu0 0
        %248 = vmatprep.subr.bf16.mxu0 0
        %249 = vmatpush1.bf16.msra.mxu0 0
        %250 = vmatprep.subr.bf16.mxu0 0
        %251 = vmatpush1.bf16.msra.mxu0 0
        %252 = vmatprep.subr.bf16.mxu0 0
        %253 = vmatpush1.bf16.msra.mxu0 0
        %254 = vmatprep.subr.bf16.mxu0 0
        %255 = vmatpush1.bf16.msra.mxu0 0
        %256 = vmatprep.subr.bf16.mxu0 0
        %257 = vmatpush1.bf16.msra.mxu0 0
        %258 = vmatprep.subr.bf16.mxu0 0
        %259 = vmatpush1.bf16.msra.mxu0 0
        %260 = vmatprep.subr.bf16.mxu0 %v236
        %261 = vmatpush1.bf16.msra.mxu0 %v235
        %262 = vmatprep.subr.bf16.mxu0 0
        %263 = vmatpush2.bf16.msra.mxu0 0
        %264 = vmatprep.subr.bf16.mxu0 0
        %265 = vmatpush2.bf16.msra.mxu0 0
        %266 = vmatprep.subr.bf16.mxu0 0
        %267 = vmatpush2.bf16.msra.mxu0 0
        %268 = vmatprep.subr.bf16.mxu0 0
        %269 = vmatpush2.bf16.msra.mxu0 0
        %270 = vmatprep.subr.bf16.mxu0 0
        %271 = vmatpush2.bf16.msra.mxu0 0
        %272 = vmatprep.subr.bf16.mxu0 0
        %273 = vmatpush2.bf16.msra.mxu0 0
        %274 = vmatprep.subr.bf16.mxu0 0
        %275 = vmatpush2.bf16.msra.mxu0 0
        %276 = vmatprep.subr.bf16.mxu0 0
        %277 = vmatpush2.bf16.msra.mxu0 0
        %278 = vmatprep.mubr.bf16.mxu0 0
        %279 = vmatmul.mubr.bf16.gmra.mxu0 %v241
        %v280 = vpop.f32.mrf.mxu0
        %v281 = vadd.f32 %v209, %v280
        %v282 = vpop.f32.mrf.mxu0
        %v283 = vadd.f32 %v209, %v282
        %v284 = vpop.f32.mrf.mxu0
        %v285 = vadd.f32 %v214, %v284
        %v286 = vpop.f32.mrf.mxu0
        %v287 = vadd.f32 %v214, %v286
        %288 = vmatprep.mubr.bf16.mxu0 0
        %289 = vmatmul.mubr.bf16.gmra.mxu0 %v244
        %v290 = vpop.f32.mrf.mxu0
        %v291 = vadd.f32 %v219, %v290
        %v292 = vpop.f32.mrf.mxu0
        %v293 = vadd.f32 %v219, %v292
        %v294 = vpop.f32.mrf.mxu0
        %v295 = vpop.f32.mrf.mxu0
        %296 = vdwg.mxu0
        %v297 = vmul.f32 %v291, %v291
        %v298 = vmul.f32 %v293, %v293
        %v301 = vrot.slane %v297, 2
        %v302 = vrot.slane %v298, 2
        %vm305 = vcmask 1041408
        %v306 = vsel %vm305, %v301, 0.0
        %v307 = vrot.slane %v306, 4
        %v308 = vadd.f32 %v306, %v307
        %v309 = vrot.slane %v308, 2
        %v310 = vadd.f32 %v308, %v309
        %v311 = vrot.slane %v310, 1
        %v312 = vadd.f32 %v310, %v311
        %v313 = vsel %vm305, %v302, 0.0
        %v314 = vrot.slane %v313, 4
        %v315 = vadd.f32 %v313, %v314
        %v316 = vrot.slane %v315, 2
        %v317 = vadd.f32 %v315, %v316
        %v318 = vrot.slane %v317, 1
        %v319 = vadd.f32 %v317, %v318
        %v320 = vrsqrt.pop %v312
        %v321 = vrsqrt.pop %v319
        %v322 = vmul.f32 %v291, %v320
        %v323 = vmul.f32 %v293, %v321
        %v324 = vsel %vm305, %v297, 0.0
        %v325 = vrot.slane %v324, 4
        %v326 = vadd.f32 %v324, %v325
        %v327 = vrot.slane %v326, 2
        %v328 = vadd.f32 %v326, %v327
        %v329 = vrot.slane %v328, 1
        %v330 = vadd.f32 %v328, %v329
        %v331 = vsel %vm305, %v298, 0.0
        %v332 = vrot.slane %v331, 4
        %v333 = vadd.f32 %v331, %v332
        %v334 = vrot.slane %v333, 2
        %v335 = vadd.f32 %v333, %v334
        %v336 = vrot.slane %v335, 1
        %v337 = vadd.f32 %v335, %v336
        %v338 = vrsqrt.pop %v330
        %v339 = vrsqrt.pop %v337
        %v340 = vmul.f32 %v291, %v338
        %v341 = vmul.f32 %v293, %v339
        %v342 = vsel %vm305, %v340, 0.0
        %v343 = vsel %vm305, %v341, 0.0
        %v344 = vadd.f32 %v342, %v343
        %345 = vadd.xlane.f32.xlu0 %v344
        %v346 = vpop.xlane.xlu0 %345
        %v347 = vadd.f32 %v346, 1e-06
        %v349 = vrot.slane %v347, 6
        %v351 = vmul.f32 %v322, %v349
        %v352 = vmul.f32 %v323, %v349
        %v355 = vrot.slane %v351, 2
        %v356 = vrot.slane %v352, 2
        %v359 = vsel %vm305, %v355, 0.0
        %v360 = vrot.slane %v359, 4
        %v361 = vadd.f32 %v359, %v360
        %v362 = vrot.slane %v361, 2
        %v363 = vadd.f32 %v361, %v362
        %v364 = vrot.slane %v363, 1
        %v365 = vadd.f32 %v363, %v364
        %v366 = vsel %vm305, %v356, 0.0
        %v367 = vrot.slane %v366, 4
        %v368 = vadd.f32 %v366, %v367
        %v369 = vrot.slane %v368, 2
        %v370 = vadd.f32 %v368, %v369
        %v371 = vrot.slane %v370, 1
        %v372 = vadd.f32 %v370, %v371
        %v373 = vadd.f32 %v365, 256.0
        %v374 = vadd.f32 %v372, 256.0
        %v375 = vrcp.pop %v373
        %v376 = vrcp.pop %v374
        %v377 = vadd.f32 %v281, %v283
        %378 = vadd.xlane.f32.xlu0 %v377
        %v379 = vpop.xlane.xlu0 %378
        %v380 = vadd.f32 %v285, %v287
        %381 = vadd.xlane.f32.xlu0 %v380
        %v382 = vpop.xlane.xlu0 %381
        %383 = vmatprep.subr.mxu0 0.0
        %384 = vmatpush1.xpose.msra.mxu0 0.0
        %385 = vmatprep.subr.mxu0 0.0
        %386 = vmatpush1.xpose.msra.mxu0 0.0
        %387 = vmatprep.subr.mxu0 0.0
        %388 = vmatpush1.xpose.msra.mxu0 0.0
        %389 = vmatprep.subr.mxu0 0.0
        %390 = vmatpush1.xpose.msra.mxu0 0.0
        %391 = vmatprep.subr.mxu0 0.0
        %392 = vmatpush1.xpose.msra.mxu0 0.0
        %393 = vmatprep.subr.mxu0 0.0
        %394 = vmatpush1.xpose.msra.mxu0 0.0
        %395 = vmatprep.subr.mxu0 0.0
        %396 = vmatpush1.xpose.msra.mxu0 0.0
        %397 = vmatprep.subr.mxu0 0.0
        %398 = vmatpush1.xpose.msra.mxu0 0.0
        %399 = vmatprep.subr.mxu0 0.0
        %400 = vmatpush1.xpose.msra.mxu0 0.0
        %401 = vmatprep.subr.mxu0 0.0
        %402 = vmatpush1.xpose.msra.mxu0 0.0
        %403 = vmatprep.subr.mxu0 0.0
        %404 = vmatpush1.xpose.msra.mxu0 0.0
        %405 = vmatprep.subr.mxu0 0.0
        %406 = vmatpush1.xpose.msra.mxu0 0.0
        %407 = vmatprep.subr.mxu0 0.0
        %408 = vmatpush1.xpose.msra.mxu0 0.0
        %409 = vmatprep.subr.mxu0 0.0
        %410 = vmatpush1.xpose.msra.mxu0 0.0
        %411 = vmatprep.subr.mxu0 0.0
        %412 = vmatpush1.xpose.msra.mxu0 0.0
        %413 = vmatprep.subr.mxu0 %v341
        %414 = vmatpush1.xpose.msra.mxu0 %v340
        %415 = vmatprep.subr.mxu0 0.0
        %416 = vmatpush2.xpose.msra.mxu0 0.0
        %417 = vmatprep.subr.mxu0 0.0
        %418 = vmatpush2.xpose.msra.mxu0 0.0
        %419 = vmatprep.subr.mxu0 0.0
        %420 = vmatpush2.xpose.msra.mxu0 0.0
        %421 = vmatprep.subr.mxu0 0.0
        %422 = vmatpush2.xpose.msra.mxu0 0.0
        %423 = vmatprep.subr.mxu0 0.0
        %424 = vmatpush2.xpose.msra.mxu0 0.0
        %425 = vmatprep.subr.mxu0 0.0
        %426 = vmatpush2.xpose.msra.mxu0 0.0
        %427 = vmatprep.subr.mxu0 0.0
        %428 = vmatpush2.xpose.msra.mxu0 0.0
        %429 = vmatprep.subr.mxu0 0.0
        %430 = vmatpush2.xpose.msra.mxu0 0.0
        %431 = vmatprep.subr.mxu0 0.0
        %432 = vmatpush2.xpose.msra.mxu0 0.0
        %433 = vmatprep.subr.mxu0 0.0
        %434 = vmatpush2.xpose.msra.mxu0 0.0
        %435 = vmatprep.subr.mxu0 0.0
        %436 = vmatpush2.xpose.msra.mxu0 0.0
        %437 = vmatprep.subr.mxu0 0.0
        %438 = vmatpush2.xpose.msra.mxu0 0.0
        %439 = vmatprep.subr.mxu0 0.0
        %440 = vmatpush2.xpose.msra.mxu0 0.0
        %441 = vmatprep.subr.mxu0 0.0
        %442 = vmatpush2.xpose.msra.mxu0 0.0
        %443 = vmatprep.subr.mxu0 0.0
        %444 = vmatpush2.xpose.msra.mxu0 0.0
        %445 = vmatprep.subr.mxu0 0.0
        %446 = vmatpush2.xpose.msra.mxu0 0.0
        %447 = vmatprep.mubr.f32.mxu0 %v283
        %448 = vmatmul.mubr.f32.gmra.mxu0 %v281
        %v449 = vpop.f32.mrf.mxu0
        %v450 = vadd.f32 0.0, %v449
        %v451 = vpop.f32.mrf.mxu0
        %452 = vmatprep.mubr.f32.mxu0 %v287
        %453 = vmatmul.mubr.f32.gmra.mxu0 %v285
        %v454 = vpop.f32.mrf.mxu0
        %v455 = vadd.f32 0.0, %v454
        %v456 = vpop.f32.mrf.mxu0
        %457 = vdwg.mxu0
        %v460 = vrot.slane %v322, 2
        %v461 = vrot.slane %v323, 2
        %vm462 = vcmask 15360
        %v464 = vsel %vm462, %v450, 0
        %v467 = vsel %vm462, %v455, 0
        %v469 = vsel %vm305, %v460, 0
        %v471 = vsel %vm305, %v461, 0
        %473 = vmatprep.subr.mxu0 0.0
        %474 = vmatpush1.msra.mxu0 0.0
        %475 = vmatprep.subr.mxu0 0.0
        %476 = vmatpush1.msra.mxu0 0.0
        %477 = vmatprep.subr.mxu0 0.0
        %478 = vmatpush1.msra.mxu0 0.0
        %479 = vmatprep.subr.mxu0 0.0
        %480 = vmatpush1.msra.mxu0 0.0
        %481 = vmatprep.subr.mxu0 0.0
        %482 = vmatpush1.msra.mxu0 0.0
        %483 = vmatprep.subr.mxu0 0.0
        %484 = vmatpush1.msra.mxu0 0.0
        %485 = vmatprep.subr.mxu0 0.0
        %486 = vmatpush1.msra.mxu0 0.0
        %487 = vmatprep.subr.mxu0 0.0
        %488 = vmatpush1.msra.mxu0 0.0
        %489 = vmatprep.subr.mxu0 0.0
        %490 = vmatpush1.msra.mxu0 0.0
        %491 = vmatprep.subr.mxu0 0.0
        %492 = vmatpush1.msra.mxu0 0.0
        %493 = vmatprep.subr.mxu0 0.0
        %494 = vmatpush1.msra.mxu0 0.0
        %495 = vmatprep.subr.mxu0 0.0
        %496 = vmatpush1.msra.mxu0 0.0
        %497 = vmatprep.subr.mxu0 0.0
        %498 = vmatpush1.msra.mxu0 0.0
        %499 = vmatprep.subr.mxu0 0.0
        %500 = vmatpush1.msra.mxu0 0.0
        %501 = vmatprep.subr.mxu0 0.0
        %502 = vmatpush1.msra.mxu0 0.0
        %503 = vmatprep.subr.mxu0 %v471
        %504 = vmatpush1.msra.mxu0 %v469
        %505 = vmatprep.subr.mxu0 0.0
        %506 = vmatpush2.msra.mxu0 0.0
        %507 = vmatprep.subr.mxu0 0.0
        %508 = vmatpush2.msra.mxu0 0.0
        %509 = vmatprep.subr.mxu0 0.0
        %510 = vmatpush2.msra.mxu0 0.0
        %511 = vmatprep.subr.mxu0 0.0
        %512 = vmatpush2.msra.mxu0 0.0
        %513 = vmatprep.subr.mxu0 0.0
        %514 = vmatpush2.msra.mxu0 0.0
        %515 = vmatprep.subr.mxu0 0.0
        %516 = vmatpush2.msra.mxu0 0.0
        %517 = vmatprep.subr.mxu0 0.0
        %518 = vmatpush2.msra.mxu0 0.0
        %519 = vmatprep.subr.mxu0 0.0
        %520 = vmatpush2.msra.mxu0 0.0
        %521 = vmatprep.subr.mxu0 0.0
        %522 = vmatpush2.msra.mxu0 0.0
        %523 = vmatprep.subr.mxu0 0.0
        %524 = vmatpush2.msra.mxu0 0.0
        %525 = vmatprep.subr.mxu0 0.0
        %526 = vmatpush2.msra.mxu0 0.0
        %527 = vmatprep.subr.mxu0 0.0
        %528 = vmatpush2.msra.mxu0 0.0
        %529 = vmatprep.subr.mxu0 0.0
        %530 = vmatpush2.msra.mxu0 0.0
        %531 = vmatprep.subr.mxu0 0.0
        %532 = vmatpush2.msra.mxu0 0.0
        %533 = vmatprep.subr.mxu0 0.0
        %534 = vmatpush2.msra.mxu0 0.0
        %535 = vmatprep.subr.mxu0 0.0
        %536 = vmatpush2.msra.mxu0 0.0
        %537 = vmatprep.mubr.f32.mxu0 0.0
        %538 = vmatmul.mubr.f32.gmra.mxu0 %v464
        %v539 = vpop.f32.mrf.mxu0
        %v540 = vadd.f32 0.0, %v539
        %v541 = vpop.f32.mrf.mxu0
        %v542 = vadd.f32 0.0, %v541
        %543 = vmatprep.mubr.f32.mxu0 0.0
        %544 = vmatmul.mubr.f32.gmra.mxu0 %v467
        %v545 = vpop.f32.mrf.mxu0
        %v546 = vadd.f32 0.0, %v545
        %v547 = vpop.f32.mrf.mxu0
        %v548 = vadd.f32 0.0, %v547
        %549 = vdwg.mxu0
        %v550 = vadd.f32 %v379, %v540
        %v551 = vadd.f32 %v379, %v542
        %v552 = vadd.f32 %v382, %v546
        %v553 = vadd.f32 %v382, %v548
        %v554 = vmul.f32 %v550, %v375
        %v555 = vmul.f32 %v551, %v376
        %v556 = vmul.f32 %v552, %v375
        %v557 = vmul.f32 %v553, %v376
        %s558 = sld [smem:[#allocation2]]
        %v559 = vunpack.c.l.bf16 %v198
        %v560 = vunpack.c.h.bf16 %v198
        %v561 = vunpack.c.l.bf16 %v199
        %v562 = vunpack.c.h.bf16 %v199
        %v563 = vstv %s558
        %v564 = vmul.f32 %v563, %v554
        %v565 = vmul.f32 %v563, %v555
        %v566 = vmul.f32 %v563, %v556
        %v567 = vmul.f32 %v563, %v557
        %v568 = vadd.f32 %v559, %v564
        %v569 = vadd.f32 %v560, %v565
        %v570 = vadd.f32 %v561, %v566
        %v571 = vadd.f32 %v562, %v567
        %572 = vst [vmem:[%s191] sm:$0xff] %v568
        %573 = vst [vmem:[%s191 + $0x8] sm:$0xff] %v569
        %574 = vst [vmem:[%s191 + $0x10] sm:$0xff] %v570
        %575 = vst [vmem:[%s191 + $0x18] sm:$0xff] %v571
        %s576 = sand.u32 %s116, 1
        %s577 = scalar_lea.sflag [#allocation4], %s576
        %s578 = sand.u32 %s116, 1
        %s579 = smul.addr %s578, 32
        %s580 = scalar_lea.vmem [#allocation3], %s579
        // Predicated region
        $region37: #{tpu_custom_call.1} parent=35 // pred_check
          %p581 = pneg %p126
        $region38: #{tpu_custom_call.1} parent=35 // pred_check_branch
          %583 = sbr.rel (%p581) target = $region40
        $region39: #{tpu_custom_call.1} parent=35 // pred_region
          %s585 = ssub.s32 512, 512
          %586 = vsyncadd %s577, %s585
          %s587 = smul.addr %s19, 4
          %s588 = smul.addr %s587, 128
          %s589 = scalar_lea.hbm %s4, %s588
          %s590 = sshll.u32 %s580, 4
          %s591 = int_to_ptr.vmem [resolvable:$true] %s590
          %596 = dma.vmem_to_hbm [thread:$0]  %s591, 512, %s589, %s577, 256, 256, 16
        $region40: #{tpu_custom_call.1} parent=35 // pred_fallthru
          _
      $region36: #{tpu_custom_call.1} parent=5 // pred_fallthru
        _
      %p597 = scmp.le.s32.totalorder 2, %s14
      // Predicated region
      $region41: #{tpu_custom_call.1} parent=5 // pred_check
        %p598 = pneg %p597
      $region42: #{tpu_custom_call.1} parent=5 // pred_check_branch
        %600 = sbr.rel (%p598) target = $region44
      $region43: #{tpu_custom_call.1} parent=5 // pred_region
        %s601 = ssub.s32 %s14, 2
        // Predicated region
        $region45: #{tpu_custom_call.1} parent=43 // pred_check
          %p602 = pneg %p132
        $region46: #{tpu_custom_call.1} parent=43 // pred_check_branch
          %604 = sbr.rel (%p602) target = $region48
        $region47: #{tpu_custom_call.1} parent=43 // pred_region
          %s605 = sand.u32 %s117, 1
          %s606 = scalar_lea.sflag [#allocation4], %s605
          %s607 = sand.u32 %s117, 1
          %s608 = smul.addr %s607, 32
          %s609 = scalar_lea.vmem [#allocation3], %s608
          %610 = dma.done %s606, 512
        $region48: #{tpu_custom_call.1} parent=43 // pred_fallthru
          _
      $region44: #{tpu_custom_call.1} parent=5 // pred_fallthru
        _
    $region6: #{tpu_custom_call.1} parent=1 // loop_footer
      %s18 = sadd.s32 1, %s14
    $region7: #{tpu_custom_call.1} parent=1 // loop_footer_branch
      %13 = sbr.rel target = $region3
    $region8: #{tpu_custom_call.1} parent=1 // loop_exit
      _
    %611 = vsyncpa [#allocation4], 1
    %s612 = scalar_lea.sflag [#allocation4], 1
    %613 = vsyncpa %s612, 1

</llo_original>
